<compile_context>
chip_gen: v7x
topology: tpu7x:2x2x1
jax: 0.10.0
libtpu: 0.0.40
codegen_flags: <defaults>
</compile_context>

<pallas_src>
import jax
import jax.numpy as jnp
from jax.experimental import pallas as pl
from jax.experimental.pallas import tpu as pltpu

HIDDEN = 64            # per-head hidden width (matches nn.Linear(..., 64))
FUSED_H = 2 * HIDDEN   # 128 = actor|critic fused hidden, exactly one MXU tile
LANE = 128             # lane-dense output slab width


def _round_up(x, m):
    return (x + m - 1) // m * m


# ----------------------------- kernel ----------------------------------------
def actor_critic_kernel(obs_ref, w_ref, b_ref, out_ref):
    """Fused actor+critic MLP.

    obs_ref : (Bt, obs_pad)  f32   observations (lanes padded to mult of 16)
    w_ref   : (3, 128, 128)  bf16  [W1_fused, W2_blockdiag, W3_fused(out-pad)]
    b_ref   : (3, 128)       f32   fused biases
    out_ref : (Bt, 128)      f32   lanes [0:act_dim] actor, lane act_dim critic
    """
    obs_pad = obs_ref.shape[-1]          # static Python int
    b = b_ref[...]

    # Layer 1: (Bt, obs_pad) x (obs_pad, 128) -- static, sublane-aligned slice.
    x = obs_ref[...].astype(jnp.bfloat16)
    w1 = w_ref[0, :obs_pad, :]
    h = jnp.tanh(jnp.dot(x, w1, preferred_element_type=jnp.float32) + b[0:1])

    # Layer 2: block-diagonal (actor | critic), still one 128x128 MXU tile.
    h = jnp.tanh(
        jnp.dot(h.astype(jnp.bfloat16), w_ref[1],
                preferred_element_type=jnp.float32) + b[1:2])

    # Layer 3: actor logits in cols 0..act_dim-1, critic value in col act_dim.
    out = jnp.dot(h.astype(jnp.bfloat16), w_ref[2],
                  preferred_element_type=jnp.float32) + b[2:3]

    out_ref[...] = out.astype(out_ref.dtype)


# ----------------------------- wrapper ----------------------------------------
def actor_critic_forward(obs, w_slab, b_slab, act_dim, *, block_b=2048):
    """obs: (B, obs_dim) f32.  w_slab: (3,128,128) bf16.  b_slab: (3,128) f32."""
    B, obs_dim = obs.shape
    obs_pad = _round_up(obs_dim, 16)     # bf16 packed-sublane aligned
    assert obs_pad <= LANE and act_dim + 1 <= LANE

    # --- batch tiling: multiple of 8, aim for >= 2 grid steps (v7x megacore).
    Bp = _round_up(B, 8)
    half = _round_up(pl.cdiv(Bp, 2), 8)
    bb = min(block_b, half, Bp)
    bb = max(8, _round_up(bb, 8))
    bb = min(bb, Bp)
    Bp = _round_up(Bp, bb)
    grid = (Bp // bb,)

    # Rows-only (plus tiny lane-align) zero pad; no 128-lane obs slab.
    obs_p = jnp.pad(obs.astype(jnp.float32),
                    ((0, Bp - B), (0, obs_pad - obs_dim)))

    flops = 2 * Bp * LANE * (obs_pad + 2 * LANE)   # three fused matmuls
    transcendentals = 2 * Bp * LANE                # two 128-wide tanh layers
    bytes_accessed = (4 * obs_p.size + 2 * w_slab.size + 4 * b_slab.size
                      + 4 * Bp * LANE)

    out = pl.pallas_call(
        actor_critic_kernel,
        out_shape=jax.ShapeDtypeStruct((Bp, LANE), jnp.float32),
        grid=grid,
        in_specs=[
            pl.BlockSpec((bb, obs_pad), lambda i: (i, 0)),         # obs tile
            pl.BlockSpec((3, LANE, LANE), lambda i: (0, 0, 0)),    # weights resident
            pl.BlockSpec((3, LANE), lambda i: (0, 0)),             # biases resident
        ],
        out_specs=pl.BlockSpec((bb, LANE), lambda i: (i, 0)),
        compiler_params=pltpu.CompilerParams(
            dimension_semantics=("parallel",)),
        cost_estimate=pl.CostEstimate(
            flops=flops,
            transcendentals=transcendentals,
            bytes_accessed=bytes_accessed),
    )(obs_p, w_slab, b_slab)

    actor = out[:B, :act_dim]
    critic = out[:B, act_dim:act_dim + 1]
    return actor, critic


# --------------------------- param handling ------------------------------------
def init_linear(key, fan_in, fan_out):
    """PyTorch nn.Linear default init: U(-1/sqrt(fan_in), 1/sqrt(fan_in)).
    Weight already transposed to (fan_in, fan_out); bias (fan_out,)."""
    kw, kb = jax.random.split(key)
    bound = 1.0 / jnp.sqrt(jnp.float32(fan_in))
    w = jax.random.uniform(kw, (fan_in, fan_out), jnp.float32, -bound, bound)
    b = jax.random.uniform(kb, (fan_out,), jnp.float32, -bound, bound)
    return w, b


def make_params(key, obs_dim, act_dim, hidden=HIDDEN):
    keys = jax.random.split(key, 6)
    aw1, ab1 = init_linear(keys[0], obs_dim, hidden)
    aw2, ab2 = init_linear(keys[1], hidden, hidden)
    aw3, ab3 = init_linear(keys[2], hidden, act_dim)
    cw1, cb1 = init_linear(keys[3], obs_dim, hidden)
    cw2, cb2 = init_linear(keys[4], hidden, hidden)
    cw3, cb3 = init_linear(keys[5], hidden, 1)
    return [aw1, ab1, aw2, ab2, aw3, ab3, cw1, cb1, cw2, cb2, cw3, cb3]


def pack_params(params, obs_dim, act_dim):
    """Pack the 12 per-layer params once into a (3,128,128) bf16 weight slab
    and a (3,128) f32 bias slab."""
    aw1, ab1, aw2, ab2, aw3, ab3, cw1, cb1, cw2, cb2, cw3, cb3 = params
    assert obs_dim <= LANE and act_dim + 1 <= LANE

    # Layer 1: actor cols 0..63, critic cols 64..127; unused obs rows are zero.
    w1 = jnp.zeros((LANE, FUSED_H), jnp.float32)
    w1 = w1.at[:obs_dim, :HIDDEN].set(aw1)
    w1 = w1.at[:obs_dim, HIDDEN:].set(cw1)
    b1 = jnp.concatenate([ab1, cb1])

    # Layer 2: block-diagonal (off-diagonal blocks exact zeros, also in bf16).
    w2 = jnp.zeros((FUSED_H, FUSED_H), jnp.float32)
    w2 = w2.at[:HIDDEN, :HIDDEN].set(aw2)
    w2 = w2.at[HIDDEN:, HIDDEN:].set(cw2)
    b2 = jnp.concatenate([ab2, cb2])

    # Layer 3: actor -> cols 0..act_dim-1, critic -> col act_dim, rest zero.
    w3 = jnp.zeros((FUSED_H, LANE), jnp.float32)
    w3 = w3.at[:HIDDEN, :act_dim].set(aw3)
    w3 = w3.at[HIDDEN:, act_dim:act_dim + 1].set(cw3)
    b3 = jnp.zeros((LANE,), jnp.float32)
    b3 = b3.at[:act_dim].set(ab3)
    b3 = b3.at[act_dim].set(cb3[0])

    w_slab = jnp.stack([w1, w2, w3]).astype(jnp.bfloat16)   # (3, 128, 128) bf16
    b_slab = jnp.stack([b1, b2, b3])                         # (3, 128) f32
    return w_slab, b_slab


# ----------------------------- reference ----------------------------------------
def reference_forward(obs, p, matmul_dtype=jnp.float32):
    """Pure-JAX reference. matmul_dtype=bf16 mimics the kernel's quantization
    points exactly (bf16 matmul inputs, f32 accumulation / bias / tanh)."""
    (aw1, ab1, aw2, ab2, aw3, ab3, cw1, cb1, cw2, cb2, cw3, cb3) = p

    def mm(x, w):
        return jnp.dot(x.astype(matmul_dtype), w.astype(matmul_dtype),
                       preferred_element_type=jnp.float32)

    h = jnp.tanh(mm(obs, aw1) + ab1)
    h = jnp.tanh(mm(h, aw2) + ab2)
    actor = mm(h, aw3) + ab3
    h = jnp.tanh(mm(obs, cw1) + cb1)
    h = jnp.tanh(mm(h, cw2) + cb2)
    critic = mm(h, cw3) + cb3
    return actor, critic


if __name__ == "__main__":
    # Small, forward-consistent shapes (stand-in for Ant-v5's obs_dim/act_dim).
    BATCH, OBS_DIM, ACT_DIM = 8, 32, 8

    key = jax.random.PRNGKey(0)
    k_obs, k_params = jax.random.split(key)
    obs = jax.random.normal(k_obs, (BATCH, OBS_DIM), dtype=jnp.float32)
    params = make_params(k_params, OBS_DIM, ACT_DIM)
    w_slab, b_slab = pack_params(params, OBS_DIM, ACT_DIM)

    actor_out, critic_out = actor_critic_forward(obs, w_slab, b_slab, ACT_DIM)
    jax.block_until_ready((actor_out, critic_out))

    assert actor_out.shape == (BATCH, ACT_DIM)
    assert critic_out.shape == (BATCH, 1)

    # Tight check vs. a reference with identical bf16 quantization points.
    qa, qc = reference_forward(obs, params, matmul_dtype=jnp.bfloat16)
    assert jnp.allclose(actor_out, qa, atol=5e-3, rtol=5e-3)
    assert jnp.allclose(critic_out, qc, atol=5e-3, rtol=5e-3)

    # Loose check vs. the pure-f32 module semantics (bf16 matmul error only).
    fa, fc = reference_forward(obs, params, matmul_dtype=jnp.float32)
    assert jnp.allclose(actor_out, fa, atol=7e-2, rtol=7e-2)
    assert jnp.allclose(critic_out, fc, atol=7e-2, rtol=7e-2)

    print("KERNEL_OK")
</pallas_src>

<mosaic_0001>
module attributes {stable_mosaic.version = 11 : i64} {
  func.func @actor_critic_kernel(%arg0: i32, %arg1: memref<8x32xf32, #tpu.memory_space<vmem>>, %arg2: memref<3x128x128xbf16, #tpu.memory_space<vmem>>, %arg3: memref<3x128xf32, #tpu.memory_space<vmem>>, %arg4: memref<8x128xf32, #tpu.memory_space<vmem>>) attributes {dimension_semantics = [#tpu.dimension_semantics<parallel>], iteration_bounds = array<i64: 1>, scalar_prefetch = 0 : i64, scratch_operands = 0 : i64, tpu.core_type = #tpu.core_type<tc>, window_params = [{transform_indices = @transform_0, window_bounds = array<i64: 8, 32>}, {pipeline_mode = #tpu.pipeline_mode<synchronous>, transform_indices = @transform_1, window_bounds = array<i64: 3, 128, 128>}, {pipeline_mode = #tpu.pipeline_mode<synchronous>, transform_indices = @transform_2, window_bounds = array<i64: 3, 128>}, {transform_indices = @transform_3, window_bounds = array<i64: 8, 128>}]} {
    %c0 = arith.constant 0 : index
    %c0_0 = arith.constant 0 : index
    %0 = vector.load %arg3[%c0, %c0_0] : memref<3x128xf32, #tpu.memory_space<vmem>>, vector<3x128xf32>
    %c0_1 = arith.constant 0 : index
    %c0_2 = arith.constant 0 : index
    %1 = vector.load %arg1[%c0_1, %c0_2] : memref<8x32xf32, #tpu.memory_space<vmem>>, vector<8x32xf32>
    %2 = arith.truncf %1 : vector<8x32xf32> to vector<8x32xbf16>
    %c0_3 = arith.constant 0 : index
    %c0_4 = arith.constant 0 : index
    %c0_5 = arith.constant 0 : index
    %3 = vector.load %arg2[%c0_3, %c0_4, %c0_5] : memref<3x128x128xbf16, #tpu.memory_space<vmem>>, vector<1x32x128xbf16>
    %4 = vector.shape_cast %3 : vector<1x32x128xbf16> to vector<32x128xbf16>
    %cst = arith.constant dense<0.000000e+00> : vector<8x128xf32>
    %5 = tpu.matmul %2, %4, %cst {dimension_numbers = #tpu.dot_dimension_numbers<[1], [0], [0], [1], [0, 0, 1, 1], [], []>} : vector<8x32xbf16>, vector<32x128xbf16>, vector<8x128xf32> -> vector<8x128xf32>
    %6 = vector.extract_strided_slice %0 {offsets = [0, 0], sizes = [1, 128], strides = [1, 1]} : vector<3x128xf32> to vector<1x128xf32>
    %7 = vector.broadcast %6 : vector<1x128xf32> to vector<8x128xf32>
    %8 = arith.addf %5, %7 : vector<8x128xf32>
    %9 = math.tanh %8 : vector<8x128xf32>
    %10 = arith.truncf %9 : vector<8x128xf32> to vector<8x128xbf16>
    %c1 = arith.constant 1 : index
    %c0_6 = arith.constant 0 : index
    %c0_7 = arith.constant 0 : index
    %11 = vector.load %arg2[%c1, %c0_6, %c0_7] : memref<3x128x128xbf16, #tpu.memory_space<vmem>>, vector<1x128x128xbf16>
    %12 = vector.shape_cast %11 : vector<1x128x128xbf16> to vector<128x128xbf16>
    %cst_8 = arith.constant dense<0.000000e+00> : vector<8x128xf32>
    %13 = tpu.matmul %10, %12, %cst_8 {dimension_numbers = #tpu.dot_dimension_numbers<[1], [0], [0], [1], [0, 0, 1, 1], [], []>} : vector<8x128xbf16>, vector<128x128xbf16>, vector<8x128xf32> -> vector<8x128xf32>
    %14 = vector.extract_strided_slice %0 {offsets = [1, 0], sizes = [1, 128], strides = [1, 1]} : vector<3x128xf32> to vector<1x128xf32>
    %15 = vector.broadcast %14 : vector<1x128xf32> to vector<8x128xf32>
    %16 = arith.addf %13, %15 : vector<8x128xf32>
    %17 = math.tanh %16 : vector<8x128xf32>
    %18 = arith.truncf %17 : vector<8x128xf32> to vector<8x128xbf16>
    %c2 = arith.constant 2 : index
    %c0_9 = arith.constant 0 : index
    %c0_10 = arith.constant 0 : index
    %19 = vector.load %arg2[%c2, %c0_9, %c0_10] : memref<3x128x128xbf16, #tpu.memory_space<vmem>>, vector<1x128x128xbf16>
    %20 = vector.shape_cast %19 : vector<1x128x128xbf16> to vector<128x128xbf16>
    %cst_11 = arith.constant dense<0.000000e+00> : vector<8x128xf32>
    %21 = tpu.matmul %18, %20, %cst_11 {dimension_numbers = #tpu.dot_dimension_numbers<[1], [0], [0], [1], [0, 0, 1, 1], [], []>} : vector<8x128xbf16>, vector<128x128xbf16>, vector<8x128xf32> -> vector<8x128xf32>
    %22 = vector.extract_strided_slice %0 {offsets = [2, 0], sizes = [1, 128], strides = [1, 1]} : vector<3x128xf32> to vector<1x128xf32>
    %23 = vector.broadcast %22 : vector<1x128xf32> to vector<8x128xf32>
    %24 = arith.addf %21, %23 : vector<8x128xf32>
    %c0_12 = arith.constant 0 : index
    %c0_13 = arith.constant 0 : index
    %25 = vector.load %arg4[%c0_12, %c0_13] : memref<8x128xf32, #tpu.memory_space<vmem>>, vector<8x128xf32>
    tpu.vector_store %arg4[%c0_12, %c0_13], %24 {strides = array<i32>} : memref<8x128xf32, #tpu.memory_space<vmem>>, vector<8x128xf32>,
    return
  }
  func.func @transform_0(%arg0: i32) -> (i32, i32) {
    %c0_i32 = arith.constant 0 : i32
    %c0_i32_0 = arith.constant 0 : i32
    return %arg0, %c0_i32 : i32, i32
  }
  func.func @transform_1(%arg0: i32) -> (i32, i32, i32) {
    %c0_i32 = arith.constant 0 : i32
    %c0_i32_0 = arith.constant 0 : i32
    %c0_i32_1 = arith.constant 0 : i32
    %c0_i32_2 = arith.constant 0 : i32
    return %c0_i32, %c0_i32_0, %c0_i32_1 : i32, i32, i32
  }
  func.func @transform_2(%arg0: i32) -> (i32, i32) {
    %c0_i32 = arith.constant 0 : i32
    %c0_i32_0 = arith.constant 0 : i32
    %c0_i32_1 = arith.constant 0 : i32
    return %c0_i32, %c0_i32_0 : i32, i32
  }
  func.func @transform_3(%arg0: i32) -> (i32, i32) {
    %c0_i32 = arith.constant 0 : i32
    %c0_i32_0 = arith.constant 0 : i32
    return %arg0, %c0_i32 : i32, i32
  }
}

</mosaic_0001>

<llo_original>
// kernel: tpu_custom_call.1
$region0: #{tpu_custom_call.1}
  #allocation0 [shape = 'u32[]', space=smem, size = 0x4, offset = 0x4, fixed_abs, tag = 'smem constant byte address 0x4 - core index']
  #allocation1 [shape = 'u32[144,128]{1,0:T(1,128)}', space=vmem, size = 0x12000, scoped, tag = 'internal scratch']
  %s0 = inlined_call_operand.hbm [shape: f32[8,32], index: 0, kind: input, shape index: {}]
  %s1 = inlined_call_operand.hbm [shape: bf16[3,128,128], index: 1, kind: input, shape index: {}]
  %s2 = inlined_call_operand.vmem [shape: f32[3,128], index: 2, kind: input, shape index: {}]
  %s3 = inlined_call_operand.hbm [shape: f32[8,128], index: 3, kind: output, shape index: {}]
  %s4 = sld [smem:[#allocation0]]
  $region30: #{tpu_custom_call.1} parent=0
    _
  %s6 = ssub.s32 1, %s4
  %s7 = scalar_select 0, %s6, %s4
  $region1: #{tpu_custom_call.1} parent=0
    #allocation2 [shape = 'u8[4096]{0}', space=vmem, size = 0x1000, scoped, tag = 'input window, operand 0, single buffered']
    #allocation3 [shape = 's32[1]{0}', space=sflag, size = 0x4, scoped, tag = 'scoped memory for tpu_custom_call.1']
    #allocation4 [shape = 's32[1]{0}', space=sflag, size = 0x4, scoped, tag = 'scoped memory for tpu_custom_call.1']
    #allocation5 [shape = 'u8[98304]{0}', space=vmem, size = 0x18000, scoped, tag = 'input window, operand 1, single buffered']
    #allocation6 [shape = 's32[1]{0}', space=sflag, size = 0x4, scoped, tag = 'scoped memory for tpu_custom_call.1']
    #allocation7 [shape = 'u8[4096]{0}', space=vmem, size = 0x1000, scoped, tag = 'output window, operand 0, single buffered']
    %8 = vsyncpa [#allocation3], 0
    %9 = vsyncpa [#allocation6], 0
    %10 = vsyncpa [#allocation4], 0
    // Predicated region
    $region2: #{tpu_custom_call.1} parent=1 // pred_check
      _
    $region3: #{tpu_custom_call.1} parent=1 // pred_check_branch
      %12 = sbr.rel (0) target = $region5
    $region4: #{tpu_custom_call.1} parent=1 // pred_region
      %s14 = ssub.s32 128, 128
      %15 = vsyncadd [#allocation3], %s14
      %s17 = sshll.u32 [#allocation2], 4
      %s18 = int_to_ptr.vmem [resolvable:$true] %s17
      %20 = dma.hbm_to_vmem [thread:$0]  %s0, 128, %s18, [#allocation3]
    $region5: #{tpu_custom_call.1} parent=1 // pred_fallthru
      _
    // Predicated region
    $region6: #{tpu_custom_call.1} parent=1 // pred_check
      _
    $region7: #{tpu_custom_call.1} parent=1 // pred_check_branch
      %22 = sbr.rel (0) target = $region9
    $region8: #{tpu_custom_call.1} parent=1 // pred_region
      %s24 = ssub.s32 3072, 3072
      %25 = vsyncadd [#allocation6], %s24
      %s26 = sshll.u32 [#allocation5], 4
      %s27 = int_to_ptr.vmem [resolvable:$true] %s26
      %32 = dma.hbm_to_vmem [thread:$0]  %s1, 3072, %s27, [#allocation6], 64, 64, 4
    $region9: #{tpu_custom_call.1} parent=1 // pred_fallthru
      _
    // Predicated region
    $region10: #{tpu_custom_call.1} parent=1 // pred_check
      _
    $region11: #{tpu_custom_call.1} parent=1 // pred_check_branch
      %34 = sbr.rel (0) target = $region13
    $region12: #{tpu_custom_call.1} parent=1 // pred_region
      _
    $region13: #{tpu_custom_call.1} parent=1 // pred_fallthru
      _
    // Predicated region
    $region14: #{tpu_custom_call.1} parent=1 // pred_check
      _
    $region15: #{tpu_custom_call.1} parent=1 // pred_check_branch
      %36 = sbr.rel (0) target = $region17
    $region16: #{tpu_custom_call.1} parent=1 // pred_region
      %37 = dma.done [#allocation3], 128
    $region17: #{tpu_custom_call.1} parent=1 // pred_fallthru
      _
    // Predicated region
    $region18: #{tpu_custom_call.1} parent=1 // pred_check
      _
    $region19: #{tpu_custom_call.1} parent=1 // pred_check_branch
      %39 = sbr.rel (0) target = $region21
    $region20: #{tpu_custom_call.1} parent=1 // pred_region
      %40 = dma.done [#allocation6], 3072
    $region21: #{tpu_custom_call.1} parent=1 // pred_fallthru
      _
    %v42 = vld [vmem:[%s2] sm:$0x7]
    %v43 = vld [vmem:[#allocation2] sm:$0xff]
    %v44 = vpack.c.bf16 %v43, %v43
    %v45 = vld [vmem:[#allocation5] sm:$0xf]
    %v46 = vld [vmem:[#allocation5 + $0x4] sm:$0xf]
    %v47 = vld [vmem:[#allocation5 + $0x8] sm:$0xf]
    %v48 = vld [vmem:[#allocation5 + $0xc] sm:$0xf]
    %v49 = vlaneseq
    %v50 = vshrl.u32 %v49, 7
    %v51 = vsub.s32 0, %v50
    %v52 = vrot.slane %v42, %v51
    %v57 = vunpack.c.l.b16 %v45
    %v58 = vunpack.c.l.b16 %v46
    %v59 = vunpack.c.l.b16 %v47
    %v60 = vunpack.c.l.b16 %v48
    %v61 = vpack.c.b16 %v58, %v57
    %v62 = vpack.c.b16 %v60, %v59
    %vm65 = vcmask 261120
    %v67 = vsel %vm65, %v44, 0
    %69 = vmatprep.subr.bf16.mxu0 0
    %70 = vmatpush1.bf16.msra.mxu0 %v61
    %71 = vmatprep.subr.bf16.mxu0 0
    %72 = vmatpush1.bf16.msra.mxu0 %v62
    %73 = vmatprep.subr.bf16.mxu0 0
    %74 = vmatpush1.bf16.msra.mxu0 0
    %75 = vmatprep.subr.bf16.mxu0 0
    %76 = vmatpush1.bf16.msra.mxu0 0
    %77 = vmatprep.subr.bf16.mxu0 0
    %78 = vmatpush1.bf16.msra.mxu0 0
    %79 = vmatprep.subr.bf16.mxu0 0
    %80 = vmatpush1.bf16.msra.mxu0 0
    %81 = vmatprep.subr.bf16.mxu0 0
    %82 = vmatpush1.bf16.msra.mxu0 0
    %83 = vmatprep.subr.bf16.mxu0 0
    %84 = vmatpush1.bf16.msra.mxu0 0
    %85 = vmatprep.subr.bf16.mxu0 0
    %86 = vmatpush1.bf16.msra.mxu0 0
    %87 = vmatprep.subr.bf16.mxu0 0
    %88 = vmatpush1.bf16.msra.mxu0 0
    %89 = vmatprep.subr.bf16.mxu0 0
    %90 = vmatpush1.bf16.msra.mxu0 0
    %91 = vmatprep.subr.bf16.mxu0 0
    %92 = vmatpush1.bf16.msra.mxu0 0
    %93 = vmatprep.subr.bf16.mxu0 0
    %94 = vmatpush1.bf16.msra.mxu0 0
    %95 = vmatprep.subr.bf16.mxu0 0
    %96 = vmatpush1.bf16.msra.mxu0 0
    %97 = vmatprep.subr.bf16.mxu0 0
    %98 = vmatpush1.bf16.msra.mxu0 0
    %99 = vmatprep.subr.bf16.mxu0 0
    %100 = vmatpush1.bf16.msra.mxu0 0
    %101 = vmatprep.mubr.bf16.mxu0 0
    %102 = vmatmul.mubr.bf16.gmra.mrb[0].mxu0 %v67
    %v103 = vpop.f32.mrb[0].mxu0
    %v104 = vadd.f32 %v52, %v103
    %v105 = vpop.f32.mrb[0].mxu0
    %v106 = vpop.f32.mrb[0].mxu0
    %v107 = vpop.f32.mrb[0].mxu0
    %108 = vdwg.mxu0
    %v109 = vtanh.pop %v104
    %v110 = vpack.c.bf16 %v109, %v109
    %s111 = scalar_lea.vmem [#allocation5], 64
    %v112 = vld [vmem:[%s111] sm:$0xf]
    %v113 = vld [vmem:[%s111 + $0x4] sm:$0xf]
    %v114 = vld [vmem:[%s111 + $0x8] sm:$0xf]
    %v115 = vld [vmem:[%s111 + $0xc] sm:$0xf]
    %v116 = vld [vmem:[%s111 + $0x10] sm:$0xf]
    %v117 = vld [vmem:[%s111 + $0x14] sm:$0xf]
    %v118 = vld [vmem:[%s111 + $0x18] sm:$0xf]
    %v119 = vld [vmem:[%s111 + $0x1c] sm:$0xf]
    %v120 = vld [vmem:[%s111 + $0x20] sm:$0xf]
    %v121 = vld [vmem:[%s111 + $0x24] sm:$0xf]
    %v122 = vld [vmem:[%s111 + $0x28] sm:$0xf]
    %v123 = vld [vmem:[%s111 + $0x2c] sm:$0xf]
    %v124 = vld [vmem:[%s111 + $0x30] sm:$0xf]
    %v125 = vld [vmem:[%s111 + $0x34] sm:$0xf]
    %v126 = vld [vmem:[%s111 + $0x38] sm:$0xf]
    %v127 = vld [vmem:[%s111 + $0x3c] sm:$0xf]
    %v128 = vlaneseq
    %v129 = vshrl.u32 %v128, 7
    %v130 = vsub.s32 1, %v129
    %v131 = vrot.slane %v42, %v130
    %v148 = vunpack.c.l.b16 %v112
    %v149 = vunpack.c.l.b16 %v113
    %v150 = vunpack.c.l.b16 %v114
    %v151 = vunpack.c.l.b16 %v115
    %v152 = vunpack.c.l.b16 %v116
    %v153 = vunpack.c.l.b16 %v117
    %v154 = vunpack.c.l.b16 %v118
    %v155 = vunpack.c.l.b16 %v119
    %v156 = vunpack.c.l.b16 %v120
    %v157 = vunpack.c.l.b16 %v121
    %v158 = vunpack.c.l.b16 %v122
    %v159 = vunpack.c.l.b16 %v123
    %v160 = vunpack.c.l.b16 %v124
    %v161 = vunpack.c.l.b16 %v125
    %v162 = vunpack.c.l.b16 %v126
    %v163 = vunpack.c.l.b16 %v127
    %v164 = vpack.c.b16 %v149, %v148
    %v165 = vpack.c.b16 %v151, %v150
    %v166 = vpack.c.b16 %v153, %v152
    %v167 = vpack.c.b16 %v155, %v154
    %v168 = vpack.c.b16 %v157, %v156
    %v169 = vpack.c.b16 %v159, %v158
    %v170 = vpack.c.b16 %v161, %v160
    %v171 = vpack.c.b16 %v163, %v162
    %180 = vmatprep.subr.bf16.mxu0 0
    %181 = vmatpush1.bf16.msra.mxu0 %v164
    %182 = vmatprep.subr.bf16.mxu0 0
    %183 = vmatpush1.bf16.msra.mxu0 %v165
    %184 = vmatprep.subr.bf16.mxu0 0
    %185 = vmatpush1.bf16.msra.mxu0 %v166
    %186 = vmatprep.subr.bf16.mxu0 0
    %187 = vmatpush1.bf16.msra.mxu0 %v167
    %188 = vmatprep.subr.bf16.mxu0 0
    %189 = vmatpush1.bf16.msra.mxu0 %v168
    %190 = vmatprep.subr.bf16.mxu0 0
    %191 = vmatpush1.bf16.msra.mxu0 %v169
    %192 = vmatprep.subr.bf16.mxu0 0
    %193 = vmatpush1.bf16.msra.mxu0 %v170
    %194 = vmatprep.subr.bf16.mxu0 0
    %195 = vmatpush1.bf16.msra.mxu0 %v171
    %196 = vmatprep.subr.bf16.mxu0 0
    %197 = vmatpush1.bf16.msra.mxu0 0
    %198 = vmatprep.subr.bf16.mxu0 0
    %199 = vmatpush1.bf16.msra.mxu0 0
    %200 = vmatprep.subr.bf16.mxu0 0
    %201 = vmatpush1.bf16.msra.mxu0 0
    %202 = vmatprep.subr.bf16.mxu0 0
    %203 = vmatpush1.bf16.msra.mxu0 0
    %204 = vmatprep.subr.bf16.mxu0 0
    %205 = vmatpush1.bf16.msra.mxu0 0
    %206 = vmatprep.subr.bf16.mxu0 0
    %207 = vmatpush1.bf16.msra.mxu0 0
    %208 = vmatprep.subr.bf16.mxu0 0
    %209 = vmatpush1.bf16.msra.mxu0 0
    %210 = vmatprep.subr.bf16.mxu0 0
    %211 = vmatpush1.bf16.msra.mxu0 0
    %212 = vmatprep.mubr.bf16.mxu0 0
    %213 = vmatmul.mubr.bf16.gmra.mrb[0].mxu0 %v110
    %v214 = vpop.f32.mrb[0].mxu0
    %v215 = vadd.f32 %v131, %v214
    %v216 = vpop.f32.mrb[0].mxu0
    %v217 = vpop.f32.mrb[0].mxu0
    %v218 = vpop.f32.mrb[0].mxu0
    %219 = vdwg.mxu0
    %v220 = vtanh.pop %v215
    %v221 = vpack.c.bf16 %v220, %v220
    %s222 = scalar_lea.vmem [#allocation5], 128
    %v223 = vld [vmem:[%s222] sm:$0xf]
    %v224 = vld [vmem:[%s222 + $0x4] sm:$0xf]
    %v225 = vld [vmem:[%s222 + $0x8] sm:$0xf]
    %v226 = vld [vmem:[%s222 + $0xc] sm:$0xf]
    %v227 = vld [vmem:[%s222 + $0x10] sm:$0xf]
    %v228 = vld [vmem:[%s222 + $0x14] sm:$0xf]
    %v229 = vld [vmem:[%s222 + $0x18] sm:$0xf]
    %v230 = vld [vmem:[%s222 + $0x1c] sm:$0xf]
    %v231 = vld [vmem:[%s222 + $0x20] sm:$0xf]
    %v232 = vld [vmem:[%s222 + $0x24] sm:$0xf]
    %v233 = vld [vmem:[%s222 + $0x28] sm:$0xf]
    %v234 = vld [vmem:[%s222 + $0x2c] sm:$0xf]
    %v235 = vld [vmem:[%s222 + $0x30] sm:$0xf]
    %v236 = vld [vmem:[%s222 + $0x34] sm:$0xf]
    %v237 = vld [vmem:[%s222 + $0x38] sm:$0xf]
    %v238 = vld [vmem:[%s222 + $0x3c] sm:$0xf]
    %v239 = vlaneseq
    %v240 = vshrl.u32 %v239, 7
    %v241 = vsub.s32 2, %v240
    %v242 = vrot.slane %v42, %v241
    %v259 = vunpack.c.l.b16 %v223
    %v260 = vunpack.c.l.b16 %v224
    %v261 = vunpack.c.l.b16 %v225
    %v262 = vunpack.c.l.b16 %v226
    %v263 = vunpack.c.l.b16 %v227
    %v264 = vunpack.c.l.b16 %v228
    %v265 = vunpack.c.l.b16 %v229
    %v266 = vunpack.c.l.b16 %v230
    %v267 = vunpack.c.l.b16 %v231
    %v268 = vunpack.c.l.b16 %v232
    %v269 = vunpack.c.l.b16 %v233
    %v270 = vunpack.c.l.b16 %v234
    %v271 = vunpack.c.l.b16 %v235
    %v272 = vunpack.c.l.b16 %v236
    %v273 = vunpack.c.l.b16 %v237
    %v274 = vunpack.c.l.b16 %v238
    %v275 = vpack.c.b16 %v260, %v259
    %v276 = vpack.c.b16 %v262, %v261
    %v277 = vpack.c.b16 %v264, %v263
    %v278 = vpack.c.b16 %v266, %v265
    %v279 = vpack.c.b16 %v268, %v267
    %v280 = vpack.c.b16 %v270, %v269
    %v281 = vpack.c.b16 %v272, %v271
    %v282 = vpack.c.b16 %v274, %v273
    %291 = vmatprep.subr.bf16.mxu0 0
    %292 = vmatpush1.bf16.msra.mxu0 %v275
    %293 = vmatprep.subr.bf16.mxu0 0
    %294 = vmatpush1.bf16.msra.mxu0 %v276
    %295 = vmatprep.subr.bf16.mxu0 0
    %296 = vmatpush1.bf16.msra.mxu0 %v277
    %297 = vmatprep.subr.bf16.mxu0 0
    %298 = vmatpush1.bf16.msra.mxu0 %v278
    %299 = vmatprep.subr.bf16.mxu0 0
    %300 = vmatpush1.bf16.msra.mxu0 %v279
    %301 = vmatprep.subr.bf16.mxu0 0
    %302 = vmatpush1.bf16.msra.mxu0 %v280
    %303 = vmatprep.subr.bf16.mxu0 0
    %304 = vmatpush1.bf16.msra.mxu0 %v281
    %305 = vmatprep.subr.bf16.mxu0 0
    %306 = vmatpush1.bf16.msra.mxu0 %v282
    %307 = vmatprep.subr.bf16.mxu0 0
    %308 = vmatpush1.bf16.msra.mxu0 0
    %309 = vmatprep.subr.bf16.mxu0 0
    %310 = vmatpush1.bf16.msra.mxu0 0
    %311 = vmatprep.subr.bf16.mxu0 0
    %312 = vmatpush1.bf16.msra.mxu0 0
    %313 = vmatprep.subr.bf16.mxu0 0
    %314 = vmatpush1.bf16.msra.mxu0 0
    %315 = vmatprep.subr.bf16.mxu0 0
    %316 = vmatpush1.bf16.msra.mxu0 0
    %317 = vmatprep.subr.bf16.mxu0 0
    %318 = vmatpush1.bf16.msra.mxu0 0
    %319 = vmatprep.subr.bf16.mxu0 0
    %320 = vmatpush1.bf16.msra.mxu0 0
    %321 = vmatprep.subr.bf16.mxu0 0
    %322 = vmatpush1.bf16.msra.mxu0 0
    %323 = vmatprep.mubr.bf16.mxu0 0
    %324 = vmatmul.mubr.bf16.gmra.mrb[0].mxu0 %v221
    %v325 = vpop.f32.mrb[0].mxu0
    %v326 = vadd.f32 %v242, %v325
    %v327 = vpop.f32.mrb[0].mxu0
    %v328 = vpop.f32.mrb[0].mxu0
    %v329 = vpop.f32.mrb[0].mxu0
    %330 = vdwg.mxu0
    %331 = vst [vmem:[#allocation7] sm:$0xff] %v326
    // Predicated region
    $region22: #{tpu_custom_call.1} parent=1 // pred_check
      _
    $region23: #{tpu_custom_call.1} parent=1 // pred_check_branch
      %333 = sbr.rel (0) target = $region25
    $region24: #{tpu_custom_call.1} parent=1 // pred_region
      %s335 = ssub.s32 128, 128
      %336 = vsyncadd [#allocation4], %s335
      %s338 = sshll.u32 [#allocation7], 4
      %s339 = int_to_ptr.vmem [resolvable:$true] %s338
      %341 = dma.vmem_to_hbm [thread:$0]  %s339, 128, %s3, [#allocation4]
    $region25: #{tpu_custom_call.1} parent=1 // pred_fallthru
      _
    // Predicated region
    $region26: #{tpu_custom_call.1} parent=1 // pred_check
      _
    $region27: #{tpu_custom_call.1} parent=1 // pred_check_branch
      %343 = sbr.rel (0) target = $region29
    $region28: #{tpu_custom_call.1} parent=1 // pred_region
      %344 = dma.done [#allocation4], 128
    $region29: #{tpu_custom_call.1} parent=1 // pred_fallthru
      _
    %345 = vsyncpa [#allocation3], 1
    %346 = vsyncpa [#allocation6], 1
    %347 = vsyncpa [#allocation4], 1

</llo_original>
